<compile_context>
chip_gen: v7x
topology: tpu7x:2x2x1
jax: 0.10.0
libtpu: 0.0.40
codegen_flags: <defaults>
</compile_context>

<pallas_src>
import functools
import math

import jax
import jax.numpy as jnp
from jax.experimental import pallas as pl
from jax.experimental.pallas import tpu as pltpu


# ----------------------------- tiling helpers --------------------------------

_TM_PREFS = (1024, 512, 256, 128, 64, 32, 16)          # no 8: bf16 min sublane tile is 16
_TN_PREFS = (1536, 1152, 1024, 768, 512, 384, 256, 128)
_TQ_PREFS = (512, 256, 128, 64, 32, 16, 8)
_K_FULL_MAX = 2048                                     # contract fully in one block up to this


def _tile(dim, prefs):
    """Largest preferred tile that evenly divides `dim`, else the full dim."""
    for p in prefs:
        if dim % p == 0:
            return p
    return dim


def _tile_m(M):
    """Row tile: largest preferred divisor, preferring >=2 tiles (v7x megacore)."""
    cands = [p for p in _TM_PREFS if M % p == 0]
    if not cands:
        return M
    for p in cands:
        if M // p >= 2 and p >= 256:
            return p
    return cands[0]


def _pick_tk(K):
    if K <= _K_FULL_MAX:
        return K
    for p in (2048, 1536, 1024, 768, 512, 384, 256, 128):
        if K % p == 0:
            return p
    return K


@functools.lru_cache(maxsize=None)
def _vmem_limit_bytes():
    """Per-generation VMEM budget: ~48 MiB on v7x (64 MiB), ~96 MiB on v5e/v6e."""
    cap = 64 * 1024 * 1024
    try:
        cap = int(pltpu.get_tpu_info().vmem_capacity_bytes)
    except Exception:
        pass
    budget = cap * 3 // 4
    return int(min(max(budget, 32 * 1024 * 1024), 100 * 1024 * 1024))


def _apply_act(y, act):
    if act == "gelu":
        # tanh-approximation GELU (EUP tanh); erf form differs by <1e-3.
        return 0.5 * y * (1.0 + jnp.tanh(
            0.7978845608028654 * (y + 0.044715 * y * y * y)))
    if act == "tanh":
        return jnp.tanh(y)
    return y


def _layernorm_f32(y, gamma, beta, eps):
    # One-pass statistics: E[y] and E[y^2] reductions are independent (XLU).
    mu = jnp.mean(y, axis=-1, keepdims=True)
    mu2 = jnp.mean(y * y, axis=-1, keepdims=True)
    var = mu2 - mu * mu
    yn = (y - mu) * jax.lax.rsqrt(var + eps)
    return yn * gamma + beta


# ----------------------------- Pallas kernels --------------------------------

def _matmul_bias_act_kernel(x_ref, w_ref, b_ref, o_ref, *, act):
    """Full-K contraction: no reduction grid axis, no accumulator scratch."""
    y = jnp.dot(x_ref[...], w_ref[...], preferred_element_type=jnp.float32)
    y = _apply_act(y + b_ref[...], act)
    o_ref[...] = y.astype(o_ref.dtype)


def _matmul_bias_act_acc_kernel(x_ref, w_ref, b_ref, o_ref, acc_ref, *, act):
    """K-tiled contraction with f32 VMEM accumulator (only for K > 2048)."""
    @pl.when(pl.program_id(2) == 0)
    def _init():
        acc_ref[...] = jnp.zeros_like(acc_ref)

    acc_ref[...] += jnp.dot(x_ref[...], w_ref[...],
                            preferred_element_type=jnp.float32)

    @pl.when(pl.program_id(2) == pl.num_programs(2) - 1)
    def _finalize():
        o_ref[...] = _apply_act(acc_ref[...] + b_ref[...], act).astype(o_ref.dtype)


def _matmul_res_ln_kernel(x_ref, w_ref, b_ref, r_ref, g_ref, bb_ref, o_ref, *, eps):
    """LN((x @ w + b) + res), full-K contraction."""
    y = jnp.dot(x_ref[...], w_ref[...], preferred_element_type=jnp.float32)
    y = y + b_ref[...] + r_ref[...].astype(jnp.float32)
    o_ref[...] = _layernorm_f32(y, g_ref[...], bb_ref[...], eps).astype(o_ref.dtype)


def _matmul_res_ln_acc_kernel(x_ref, w_ref, b_ref, r_ref, g_ref, bb_ref,
                              o_ref, acc_ref, *, eps):
    """LN((x @ w + b) + res) with a K grid axis (real-model FFN down-proj)."""
    @pl.when(pl.program_id(1) == 0)
    def _init():
        acc_ref[...] = jnp.zeros_like(acc_ref)

    acc_ref[...] += jnp.dot(x_ref[...], w_ref[...],
                            preferred_element_type=jnp.float32)

    @pl.when(pl.program_id(1) == pl.num_programs(1) - 1)
    def _finalize():
        y = acc_ref[...] + b_ref[...] + r_ref[...].astype(jnp.float32)
        o_ref[...] = _layernorm_f32(y, g_ref[...], bb_ref[...], eps).astype(o_ref.dtype)


def _layernorm_kernel(x_ref, g_ref, b_ref, o_ref, *, eps):
    x = x_ref[...].astype(jnp.float32)
    o_ref[...] = _layernorm_f32(x, g_ref[...], b_ref[...], eps).astype(o_ref.dtype)


def _attn_kernel(q_ref, k_ref, v_ref, m_ref, o_ref, *, scale, hb, dh):
    """Single-pass softmax attention over the full kv length, hb heads / block.

    q_ref/k_ref/v_ref/o_ref blocks: (1, tq|S, hb*dh); m_ref block: (1, 1, S).
    """
    mask = m_ref[0]                                    # (1, S)  additive mask
    q_all = q_ref[0]                                   # (tq, hb*dh) bf16
    k_all = k_ref[0]                                   # (S,  hb*dh) bf16
    v_all = v_ref[0]                                   # (S,  hb*dh) bf16

    outs = []
    for h in range(hb):                                # static unroll over heads
        lo, hi = h * dh, (h + 1) * dh
        q = q_all[:, lo:hi]
        k = k_all[:, lo:hi]
        v = v_all[:, lo:hi]
        s = jax.lax.dot_general(q, k, (((1,), (1,)), ((), ())),
                                preferred_element_type=jnp.float32) * scale
        s = s + mask
        m = jnp.max(s, axis=-1, keepdims=True)
        p = jnp.exp(s - m)
        l = jnp.sum(p, axis=-1, keepdims=True)
        o = jnp.dot(p.astype(v.dtype), v, preferred_element_type=jnp.float32)
        o = o * pl.reciprocal(l, approx=True)
        outs.append(o.astype(o_ref.dtype))

    o_ref[0] = outs[0] if hb == 1 else jnp.concatenate(outs, axis=-1)


def _pool_fc_kernel(x_ref, pw_ref, pb_ref, fw_ref, fb_ref, o_ref):
    """Fused BERT pooler (tanh) + classifier head."""
    pooled = jnp.tanh(
        jnp.dot(x_ref[...], pw_ref[...], preferred_element_type=jnp.float32)
        + pb_ref[...])
    # TODO(synk): dropout(p=0.1) between pooler and fc is an inference no-op.
    logits = jnp.dot(pooled.astype(fw_ref.dtype), fw_ref[...],
                     preferred_element_type=jnp.float32) + fb_ref[...]
    o_ref[...] = logits.astype(o_ref.dtype)


# ----------------------------- pallas_call wrappers --------------------------

def linear(x, w, b, act="none", out_dtype=jnp.bfloat16):
    """y = act(x @ w + b); full-K contraction when K <= 2048, else K-tiled."""
    M, K = x.shape
    _, N = w.shape
    tm = _tile_m(M)
    tn = _tile(N, _TN_PREFS)
    tk = _pick_tk(K)
    b2 = b.reshape(1, N).astype(jnp.float32)
    vmem = _vmem_limit_bytes()

    if tk == K:
        return pl.pallas_call(
            functools.partial(_matmul_bias_act_kernel, act=act),
            grid=(M // tm, N // tn),
            in_specs=[
                pl.BlockSpec((tm, K), lambda i, j: (i, 0)),
                pl.BlockSpec((K, tn), lambda i, j: (0, j)),
                pl.BlockSpec((1, tn), lambda i, j: (0, j)),
            ],
            out_specs=pl.BlockSpec((tm, tn), lambda i, j: (i, j)),
            out_shape=jax.ShapeDtypeStruct((M, N), out_dtype),
            compiler_params=pltpu.CompilerParams(
                dimension_semantics=("parallel", "parallel"),
                vmem_limit_bytes=vmem),
        )(x, w, b2)

    return pl.pallas_call(
        functools.partial(_matmul_bias_act_acc_kernel, act=act),
        grid=(M // tm, N // tn, K // tk),
        in_specs=[
            pl.BlockSpec((tm, tk), lambda i, j, k: (i, k)),
            pl.BlockSpec((tk, tn), lambda i, j, k: (k, j)),
            pl.BlockSpec((1, tn), lambda i, j, k: (0, j)),
        ],
        out_specs=pl.BlockSpec((tm, tn), lambda i, j, k: (i, j)),
        out_shape=jax.ShapeDtypeStruct((M, N), out_dtype),
        scratch_shapes=[pltpu.VMEM((tm, tn), jnp.float32)],
        compiler_params=pltpu.CompilerParams(
            dimension_semantics=("parallel", "parallel", "arbitrary"),
            vmem_limit_bytes=vmem),
    )(x, w, b2)


def linear_residual_layernorm(x, w, b, res, gamma, beta,
                              eps=1e-12, out_dtype=jnp.bfloat16):
    """LN((x @ w + b) + res); full-H output rows so LN reduces in-register."""
    M, K = x.shape
    _, N = w.shape                                     # N == hidden (full row)
    tm = _tile_m(M)
    tk = _pick_tk(K)
    b2 = b.reshape(1, N).astype(jnp.float32)
    g2 = gamma.reshape(1, N).astype(jnp.float32)
    bb2 = beta.reshape(1, N).astype(jnp.float32)
    vmem = _vmem_limit_bytes()

    if tk == K:
        return pl.pallas_call(
            functools.partial(_matmul_res_ln_kernel, eps=eps),
            grid=(M // tm,),
            in_specs=[
                pl.BlockSpec((tm, K), lambda i: (i, 0)),
                pl.BlockSpec((K, N), lambda i: (0, 0)),
                pl.BlockSpec((1, N), lambda i: (0, 0)),
                pl.BlockSpec((tm, N), lambda i: (i, 0)),   # residual
                pl.BlockSpec((1, N), lambda i: (0, 0)),    # gamma
                pl.BlockSpec((1, N), lambda i: (0, 0)),    # beta
            ],
            out_specs=pl.BlockSpec((tm, N), lambda i: (i, 0)),
            out_shape=jax.ShapeDtypeStruct((M, N), out_dtype),
            compiler_params=pltpu.CompilerParams(
                dimension_semantics=("parallel",),
                vmem_limit_bytes=vmem),
        )(x, w, b2, res, g2, bb2)

    return pl.pallas_call(
        functools.partial(_matmul_res_ln_acc_kernel, eps=eps),
        grid=(M // tm, K // tk),
        in_specs=[
            pl.BlockSpec((tm, tk), lambda i, k: (i, k)),
            pl.BlockSpec((tk, N), lambda i, k: (k, 0)),
            pl.BlockSpec((1, N), lambda i, k: (0, 0)),
            pl.BlockSpec((tm, N), lambda i, k: (i, 0)),
            pl.BlockSpec((1, N), lambda i, k: (0, 0)),
            pl.BlockSpec((1, N), lambda i, k: (0, 0)),
        ],
        out_specs=pl.BlockSpec((tm, N), lambda i, k: (i, 0)),
        out_shape=jax.ShapeDtypeStruct((M, N), out_dtype),
        scratch_shapes=[pltpu.VMEM((tm, N), jnp.float32)],
        compiler_params=pltpu.CompilerParams(
            dimension_semantics=("parallel", "arbitrary"),
            vmem_limit_bytes=vmem),
    )(x, w, b2, res, g2, bb2)


def layernorm(x, gamma, beta, eps=1e-12, out_dtype=jnp.bfloat16):
    M, H = x.shape
    tm = _tile_m(M)
    return pl.pallas_call(
        functools.partial(_layernorm_kernel, eps=eps),
        grid=(M // tm,),
        in_specs=[
            pl.BlockSpec((tm, H), lambda i: (i, 0)),
            pl.BlockSpec((1, H), lambda i: (0, 0)),
            pl.BlockSpec((1, H), lambda i: (0, 0)),
        ],
        out_specs=pl.BlockSpec((tm, H), lambda i: (i, 0)),
        out_shape=jax.ShapeDtypeStruct((M, H), out_dtype),
        compiler_params=pltpu.CompilerParams(
            dimension_semantics=("parallel",),
            vmem_limit_bytes=_vmem_limit_bytes()),
    )(x, gamma.reshape(1, H).astype(jnp.float32),
      beta.reshape(1, H).astype(jnp.float32))


def attention(qkv, add_mask, B, S, H, nH, out_dtype=jnp.bfloat16):
    """Multi-head attention, full-S kv blocks, single-pass softmax.

    qkv: (B, S, 3H) bf16 fused QKV projection output, heads laid out as
         [q_h0..q_h{nH-1}, k_h0.., v_h0..] along the last dim, each Dh wide.
    add_mask: (B, 1, S) f32 additive attention mask (0 / -10000).
    Returns (B, S, H); heads are grouped per block so last-dim blocks are
    lane-dense (>=128 wide) even for Dh=64.
    """
    Dh = H // nH
    if Dh % 128 == 0:
        hb = 1
    else:
        hb = 128 // math.gcd(Dh, 128)                  # Dh=64 -> 2 heads/block
        if nH % hb != 0 or (hb * Dh) % 128 != 0:
            hb = 1   # TODO(synk): odd head dims fall back to non-lane-dense blocks
    hd = hb * Dh
    nhb = nH // hb
    scale = 1.0 / math.sqrt(Dh)
    tq = _tile(S, _TQ_PREFS)

    return pl.pallas_call(
        functools.partial(_attn_kernel, scale=scale, hb=hb, dh=Dh),
        grid=(B, nhb, S // tq),
        in_specs=[
            pl.BlockSpec((1, tq, hd), lambda b, h, qi: (b, qi, h)),
            pl.BlockSpec((1, S, hd), lambda b, h, qi: (b, 0, nhb + h)),
            pl.BlockSpec((1, S, hd), lambda b, h, qi: (b, 0, 2 * nhb + h)),
            pl.BlockSpec((1, 1, S), lambda b, h, qi: (b, 0, 0)),
        ],
        out_specs=pl.BlockSpec((1, tq, hd), lambda b, h, qi: (b, qi, h)),
        out_shape=jax.ShapeDtypeStruct((B, S, H), out_dtype),
        compiler_params=pltpu.CompilerParams(
            dimension_semantics=("parallel", "parallel", "parallel"),
            vmem_limit_bytes=_vmem_limit_bytes()),
    )(qkv, qkv, qkv, add_mask)


def pooler_classifier(cls, pool_w, pool_b, fc_w, fc_b):
    """Fused pooler tanh + classifier; both tiny GEMMs in one launch."""
    B, H = cls.shape
    NP = fc_w.shape[1]
    return pl.pallas_call(
        _pool_fc_kernel,
        grid=(1,),
        in_specs=[
            pl.BlockSpec((B, H), lambda i: (0, 0)),
            pl.BlockSpec((H, H), lambda i: (0, 0)),
            pl.BlockSpec((1, H), lambda i: (0, 0)),
            pl.BlockSpec((H, NP), lambda i: (0, 0)),
            pl.BlockSpec((1, NP), lambda i: (0, 0)),
        ],
        out_specs=pl.BlockSpec((B, NP), lambda i: (0, 0)),
        out_shape=jax.ShapeDtypeStruct((B, NP), jnp.float32),
        compiler_params=pltpu.CompilerParams(
            dimension_semantics=("arbitrary",),
            vmem_limit_bytes=_vmem_limit_bytes()),
    )(cls, pool_w, pool_b.reshape(1, H).astype(jnp.float32),
      fc_w, fc_b.reshape(1, NP).astype(jnp.float32))


# ------------------------------- parameters ----------------------------------

_LOGIT_PAD = 128  # lane-dense classifier output; slice to num_labels outside.


def init_params(cfg, key):
    # TODO(synk): real use loads pretrained skt/kobert-base-v1 weights; here we
    # deterministically random-init an encoder of the same structure.
    H, I, V, P, L = (cfg["hidden"], cfg["inter"], cfg["vocab"],
                     cfg["max_pos"], cfg["layers"])
    keys = iter(jax.random.split(key, 8 + 8 * L))

    def dense(i, o):
        w = (jax.random.normal(next(keys), (i, o), jnp.float32) * 0.02)
        return w.astype(jnp.bfloat16), jnp.zeros((o,), jnp.float32)

    params = {
        "word_emb": jax.random.normal(next(keys), (V, H), jnp.float32) * 0.02,
        "pos_emb": jax.random.normal(next(keys), (P, H), jnp.float32) * 0.02,
        "tok_emb": jax.random.normal(next(keys), (2, H), jnp.float32) * 0.02,
        "emb_ln_g": jnp.ones((H,), jnp.float32),
        "emb_ln_b": jnp.zeros((H,), jnp.float32),
        "layers": [],
    }
    for _ in range(L):
        qkv_w, qkv_b = dense(H, 3 * H)           # fused Q|K|V projection
        ao_w, ao_b = dense(H, H)
        i_w, i_b = dense(H, I)
        o_w, o_b = dense(I, H)
        params["layers"].append({
            "qkv_w": qkv_w, "qkv_b": qkv_b,
            "ao_w": ao_w, "ao_b": ao_b,
            "attn_ln_g": jnp.ones((H,), jnp.float32),
            "attn_ln_b": jnp.zeros((H,), jnp.float32),
            "i_w": i_w, "i_b": i_b, "o_w": o_w, "o_b": o_b,
            "out_ln_g": jnp.ones((H,), jnp.float32),
            "out_ln_b": jnp.zeros((H,), jnp.float32),
        })
    pool_w, pool_b = dense(H, H)
    fc_w, fc_b = dense(H, _LOGIT_PAD)            # padded to 128 lanes
    params.update({"pool_w": pool_w, "pool_b": pool_b,
                   "fc_w": fc_w, "fc_b": fc_b})
    return params


# -------------------------------- forward ------------------------------------

def bert_classifier_forward(params, input_ids, attention_mask,
                            token_type_ids, cfg):
    B, S = input_ids.shape
    H, nH = cfg["hidden"], cfg["heads"]

    # Embeddings (gathers are plain-JAX glue; LayerNorm is a Pallas kernel).
    we = jnp.take(params["word_emb"], input_ids, axis=0)            # (B,S,H)
    pe = params["pos_emb"][:S][None]                                # (1,S,H)
    te = jnp.take(params["tok_emb"], token_type_ids, axis=0)        # (B,S,H)
    emb = (we + pe + te).reshape(B * S, H).astype(jnp.bfloat16)
    h = layernorm(emb, params["emb_ln_g"], params["emb_ln_b"])
    # TODO(synk): embedding/hidden/attention dropouts (p=0.1) are inference
    # no-ops (nn.Dropout eval semantics), so they are omitted.

    add_mask = ((1.0 - attention_mask.astype(jnp.float32))
                * -10000.0)[:, None, :]                             # (B,1,S)

    for layer in params["layers"]:
        qkv = linear(h, layer["qkv_w"], layer["qkv_b"])             # (B*S,3H)
        ctx = attention(qkv.reshape(B, S, 3 * H), add_mask, B, S, H, nH)
        ctx = ctx.reshape(B * S, H)
        h = linear_residual_layernorm(ctx, layer["ao_w"], layer["ao_b"], h,
                                      layer["attn_ln_g"], layer["attn_ln_b"])
        inter = linear(h, layer["i_w"], layer["i_b"], act="gelu")   # (B*S,I)
        h = linear_residual_layernorm(inter, layer["o_w"], layer["o_b"], h,
                                      layer["out_ln_g"], layer["out_ln_b"])

    hidden = h.reshape(B, S, H)
    cls = hidden[:, 0, :]                                           # (B,H)
    logits_padded = pooler_classifier(cls, params["pool_w"], params["pool_b"],
                                      params["fc_w"], params["fc_b"])  # (B,128)
    return logits_padded[:, :cfg["num_labels"]]                     # (B,NL)


# --------------------------------- main ---------------------------------------

if __name__ == "__main__":
    cfg = dict(vocab=64, hidden=256, heads=2, layers=2, inter=512,
               max_pos=16, num_labels=3)
    key = jax.random.PRNGKey(0)
    pkey, ikey = jax.random.split(key)
    params = init_params(cfg, pkey)

    B, S = 2, 8
    input_ids = jax.random.randint(ikey, (B, S), 0, cfg["vocab"], dtype=jnp.int32)
    attention_mask = jnp.ones((B, S), jnp.int32)
    token_type_ids = jnp.zeros((B, S), jnp.int32)

    logits = bert_classifier_forward(params, input_ids, attention_mask,
                                     token_type_ids, cfg)
    jax.block_until_ready(logits)
    assert logits.shape == (B, cfg["num_labels"])
    assert bool(jnp.all(jnp.isfinite(logits)))
    print("KERNEL_OK")
</pallas_src>

<mosaic_0001>
module attributes {stable_mosaic.version = 11 : i64} {
  func.func @_layernorm_kernel(%arg0: i32, %arg1: memref<16x256xbf16, #tpu.memory_space<vmem>>, %arg2: memref<1x256xf32, #tpu.memory_space<vmem>>, %arg3: memref<1x256xf32, #tpu.memory_space<vmem>>, %arg4: memref<16x256xbf16, #tpu.memory_space<vmem>>) attributes {dimension_semantics = [#tpu.dimension_semantics<parallel>], iteration_bounds = array<i64: 1>, scalar_prefetch = 0 : i64, scratch_operands = 0 : i64, tpu.core_type = #tpu.core_type<tc>, window_params = [{transform_indices = @transform_0, window_bounds = array<i64: 16, 256>}, {pipeline_mode = #tpu.pipeline_mode<synchronous>, transform_indices = @transform_1, window_bounds = array<i64: 1, 256>}, {pipeline_mode = #tpu.pipeline_mode<synchronous>, transform_indices = @transform_2, window_bounds = array<i64: 1, 256>}, {transform_indices = @transform_3, window_bounds = array<i64: 16, 256>}]} {
    %c0 = arith.constant 0 : index
    %c0_0 = arith.constant 0 : index
    %0 = vector.load %arg1[%c0, %c0_0] : memref<16x256xbf16, #tpu.memory_space<vmem>>, vector<16x256xbf16>
    %1 = arith.extf %0 : vector<16x256xbf16> to vector<16x256xf32>
    %c0_1 = arith.constant 0 : index
    %c0_2 = arith.constant 0 : index
    %2 = vector.load %arg2[%c0_1, %c0_2] : memref<1x256xf32, #tpu.memory_space<vmem>>, vector<1x256xf32>
    %c0_3 = arith.constant 0 : index
    %c0_4 = arith.constant 0 : index
    %3 = vector.load %arg3[%c0_3, %c0_4] : memref<1x256xf32, #tpu.memory_space<vmem>>, vector<1x256xf32>
    %cst = arith.constant dense<0.000000e+00> : vector<16xf32>
    %4 = vector.multi_reduction <add>, %1, %cst [1] : vector<16x256xf32> to vector<16xf32>
    %5 = vector.shape_cast %4 : vector<16xf32> to vector<16x1xf32>
    %cst_5 = arith.constant 2.560000e+02 : f32
    %6 = vector.broadcast %cst_5 : f32 to vector<16x1xf32>
    %7 = arith.divf %5, %6 : vector<16x1xf32>
    %8 = arith.mulf %1, %1 : vector<16x256xf32>
    %cst_6 = arith.constant dense<0.000000e+00> : vector<16xf32>
    %9 = vector.multi_reduction <add>, %8, %cst_6 [1] : vector<16x256xf32> to vector<16xf32>
    %10 = vector.shape_cast %9 : vector<16xf32> to vector<16x1xf32>
    %cst_7 = arith.constant 2.560000e+02 : f32
    %11 = vector.broadcast %cst_7 : f32 to vector<16x1xf32>
    %12 = arith.divf %10, %11 : vector<16x1xf32>
    %13 = arith.mulf %7, %7 : vector<16x1xf32>
    %14 = arith.subf %12, %13 : vector<16x1xf32>
    %15 = vector.broadcast %7 : vector<16x1xf32> to vector<16x256xf32>
    %16 = arith.subf %1, %15 : vector<16x256xf32>
    %cst_8 = arith.constant 9.99999996E-13 : f32
    %17 = vector.broadcast %cst_8 : f32 to vector<16x1xf32>
    %18 = arith.addf %14, %17 : vector<16x1xf32>
    %19 = math.rsqrt %18 : vector<16x1xf32>
    %20 = vector.broadcast %19 : vector<16x1xf32> to vector<16x256xf32>
    %21 = arith.mulf %16, %20 : vector<16x256xf32>
    %22 = vector.broadcast %2 : vector<1x256xf32> to vector<16x256xf32>
    %23 = arith.mulf %21, %22 : vector<16x256xf32>
    %24 = vector.broadcast %3 : vector<1x256xf32> to vector<16x256xf32>
    %25 = arith.addf %23, %24 : vector<16x256xf32>
    %26 = arith.truncf %25 : vector<16x256xf32> to vector<16x256xbf16>
    %c0_9 = arith.constant 0 : index
    %c0_10 = arith.constant 0 : index
    %27 = vector.load %arg4[%c0_9, %c0_10] : memref<16x256xbf16, #tpu.memory_space<vmem>>, vector<16x256xbf16>
    tpu.vector_store %arg4[%c0_9, %c0_10], %26 {strides = array<i32>} : memref<16x256xbf16, #tpu.memory_space<vmem>>, vector<16x256xbf16>,
    return
  }
  func.func @transform_0(%arg0: i32) -> (i32, i32) {
    %c0_i32 = arith.constant 0 : i32
    %c0_i32_0 = arith.constant 0 : i32
    return %arg0, %c0_i32 : i32, i32
  }
  func.func @transform_1(%arg0: i32) -> (i32, i32) {
    %c0_i32 = arith.constant 0 : i32
    %c0_i32_0 = arith.constant 0 : i32
    %c0_i32_1 = arith.constant 0 : i32
    return %c0_i32, %c0_i32_0 : i32, i32
  }
  func.func @transform_2(%arg0: i32) -> (i32, i32) {
    %c0_i32 = arith.constant 0 : i32
    %c0_i32_0 = arith.constant 0 : i32
    %c0_i32_1 = arith.constant 0 : i32
    return %c0_i32, %c0_i32_0 : i32, i32
  }
  func.func @transform_3(%arg0: i32) -> (i32, i32) {
    %c0_i32 = arith.constant 0 : i32
    %c0_i32_0 = arith.constant 0 : i32
    return %arg0, %c0_i32 : i32, i32
  }
}

</mosaic_0001>

<llo_original>
// kernel: tpu_custom_call.1
$region0: #{tpu_custom_call.1}
  #allocation0 [shape = 'u32[]', space=smem, size = 0x4, offset = 0x4, fixed_abs, tag = 'smem constant byte address 0x4 - core index']
  #allocation1 [shape = 'u32[144,128]{1,0:T(1,128)}', space=vmem, size = 0x12000, scoped, tag = 'internal scratch']
  %s0 = inlined_call_operand.hbm [shape: bf16[16,256], index: 0, kind: input, shape index: {}]
  %s1 = inlined_call_operand.vmem [shape: f32[1,256], index: 1, kind: input, shape index: {}]
  %s2 = inlined_call_operand.vmem [shape: f32[1,256], index: 2, kind: input, shape index: {}]
  %s3 = inlined_call_operand.hbm [shape: bf16[16,256], index: 3, kind: output, shape index: {}]
  %s4 = sld [smem:[#allocation0]]
  $region26: #{tpu_custom_call.1} parent=0
    _
  %s6 = ssub.s32 1, %s4
  %s7 = scalar_select 0, %s6, %s4
  $region1: #{tpu_custom_call.1} parent=0
    #allocation2 [shape = 'u8[8192]{0}', space=vmem, size = 0x2000, scoped, tag = 'input window, operand 0, single buffered']
    #allocation3 [shape = 's32[1]{0}', space=sflag, size = 0x4, scoped, tag = 'scoped memory for tpu_custom_call.1']
    #allocation4 [shape = 's32[1]{0}', space=sflag, size = 0x4, scoped, tag = 'scoped memory for tpu_custom_call.1']
    #allocation5 [shape = 'u8[8192]{0}', space=vmem, size = 0x2000, scoped, tag = 'output window, operand 0, single buffered']
    %8 = vsyncpa [#allocation3], 0
    %9 = vsyncpa [#allocation4], 0
    // Predicated region
    $region2: #{tpu_custom_call.1} parent=1 // pred_check
      _
    $region3: #{tpu_custom_call.1} parent=1 // pred_check_branch
      %11 = sbr.rel (0) target = $region5
    $region4: #{tpu_custom_call.1} parent=1 // pred_region
      %s13 = ssub.s32 256, 256
      %14 = vsyncadd [#allocation3], %s13
      %s15 = sshll.u32 [#allocation2], 4
      %s16 = int_to_ptr.vmem [resolvable:$true] %s15
      %21 = dma.hbm_to_vmem [thread:$0]  %s0, 256, %s16, [#allocation3], 128, 128, 8
    $region5: #{tpu_custom_call.1} parent=1 // pred_fallthru
      _
    // Predicated region
    $region6: #{tpu_custom_call.1} parent=1 // pred_check
      _
    $region7: #{tpu_custom_call.1} parent=1 // pred_check_branch
      %23 = sbr.rel (0) target = $region9
    $region8: #{tpu_custom_call.1} parent=1 // pred_region
      _
    $region9: #{tpu_custom_call.1} parent=1 // pred_fallthru
      _
    // Predicated region
    $region10: #{tpu_custom_call.1} parent=1 // pred_check
      _
    $region11: #{tpu_custom_call.1} parent=1 // pred_check_branch
      %25 = sbr.rel (0) target = $region13
    $region12: #{tpu_custom_call.1} parent=1 // pred_region
      _
    $region13: #{tpu_custom_call.1} parent=1 // pred_fallthru
      _
    // Predicated region
    $region14: #{tpu_custom_call.1} parent=1 // pred_check
      _
    $region15: #{tpu_custom_call.1} parent=1 // pred_check_branch
      %27 = sbr.rel (0) target = $region17
    $region16: #{tpu_custom_call.1} parent=1 // pred_region
      %28 = dma.done [#allocation3], 256
    $region17: #{tpu_custom_call.1} parent=1 // pred_fallthru
      _
    %v29 = vld [vmem:[#allocation2] sm:$0xff]
    %v30 = vld [vmem:[#allocation2 + $0x8] sm:$0xff]
    %v31 = vunpack.c.l.bf16 %v29
    %v32 = vunpack.c.h.bf16 %v29
    %v33 = vunpack.c.l.bf16 %v30
    %v34 = vunpack.c.h.bf16 %v30
    %v35 = vld [vmem:[%s1] sm:$0x3]
    %v36 = vld [vmem:[%s2] sm:$0x3]
    %v37 = vadd.f32 %v31, %v32
    %38 = vadd.xlane.f32.xlu0 %v37
    %v39 = vpop.xlane.xlu0 %38
    %v40 = vadd.f32 %v33, %v34
    %41 = vadd.xlane.f32.xlu0 %v40
    %v42 = vpop.xlane.xlu0 %41
    %v43 = vrcp.pop 256.0
    %v44 = vmul.f32 %v39, %v43
    %v45 = vmul.f32 %v42, %v43
    %v46 = vmul.f32 %v31, %v31
    %v47 = vmul.f32 %v32, %v32
    %v48 = vmul.f32 %v33, %v33
    %v49 = vmul.f32 %v34, %v34
    %v50 = vadd.f32 %v46, %v47
    %51 = vadd.xlane.f32.xlu0 %v50
    %v52 = vpop.xlane.xlu0 %51
    %v53 = vadd.f32 %v48, %v49
    %54 = vadd.xlane.f32.xlu0 %v53
    %v55 = vpop.xlane.xlu0 %54
    %v56 = vmul.f32 %v52, %v43
    %v57 = vmul.f32 %v55, %v43
    %v58 = vmul.f32 %v44, %v44
    %v59 = vmul.f32 %v45, %v45
    %v60 = vsub.f32 %v56, %v58
    %v61 = vsub.f32 %v57, %v59
    %v62 = vsub.f32 %v31, %v44
    %v63 = vsub.f32 %v32, %v44
    %v64 = vsub.f32 %v33, %v45
    %v65 = vsub.f32 %v34, %v45
    %v66 = vadd.f32 %v60, 1e-12
    %v67 = vadd.f32 %v61, 1e-12
    %v68 = vrsqrt.pop %v66
    %v69 = vrsqrt.pop %v67
    %v70 = vmul.f32 %v62, %v68
    %v71 = vmul.f32 %v63, %v68
    %v72 = vmul.f32 %v64, %v69
    %v73 = vmul.f32 %v65, %v69
    %v75 = vlaneseq
    %v76 = vshrl.u32 %v75, 7
    %v77 = vsub.s32 0, %v76
    %v78 = vrot.slane %v35, %v77
    %v79 = vlaneseq
    %v80 = vshrl.u32 %v79, 7
    %v81 = vsub.s32 1, %v80
    %v82 = vrot.slane %v35, %v81
    %v85 = vmul.f32 %v70, %v78
    %v86 = vmul.f32 %v71, %v82
    %v87 = vmul.f32 %v72, %v78
    %v88 = vmul.f32 %v73, %v82
    %v90 = vlaneseq
    %v91 = vshrl.u32 %v90, 7
    %v92 = vsub.s32 0, %v91
    %v93 = vrot.slane %v36, %v92
    %v94 = vlaneseq
    %v95 = vshrl.u32 %v94, 7
    %v96 = vsub.s32 1, %v95
    %v97 = vrot.slane %v36, %v96
    %v100 = vadd.f32 %v85, %v93
    %v101 = vadd.f32 %v86, %v97
    %v102 = vadd.f32 %v87, %v93
    %v103 = vadd.f32 %v88, %v97
    %v104 = vpack.c.bf16 %v102, %v100
    %v105 = vpack.c.bf16 %v103, %v101
    %v108 = vunpack.c.l.b16 %v104
    %v109 = vunpack.c.l.b16 %v105
    %v110 = vunpack.c.h.b16 %v104
    %v111 = vunpack.c.h.b16 %v105
    %v112 = vpack.c.b16 %v109, %v108
    %v113 = vpack.c.b16 %v111, %v110
    %116 = vst [vmem:[#allocation5] sm:$0xff] %v112
    %117 = vst [vmem:[#allocation5 + $0x8] sm:$0xff] %v113
    // Predicated region
    $region18: #{tpu_custom_call.1} parent=1 // pred_check
      _
    $region19: #{tpu_custom_call.1} parent=1 // pred_check_branch
      %119 = sbr.rel (0) target = $region21
    $region20: #{tpu_custom_call.1} parent=1 // pred_region
      %s121 = ssub.s32 256, 256
      %122 = vsyncadd [#allocation4], %s121
      %s123 = sshll.u32 [#allocation5], 4
      %s124 = int_to_ptr.vmem [resolvable:$true] %s123
      %129 = dma.vmem_to_hbm [thread:$0]  %s124, 256, %s3, [#allocation4], 128, 128, 8
    $region21: #{tpu_custom_call.1} parent=1 // pred_fallthru
      _
    // Predicated region
    $region22: #{tpu_custom_call.1} parent=1 // pred_check
      _
    $region23: #{tpu_custom_call.1} parent=1 // pred_check_branch
      %131 = sbr.rel (0) target = $region25
    $region24: #{tpu_custom_call.1} parent=1 // pred_region
      %132 = dma.done [#allocation4], 256
    $region25: #{tpu_custom_call.1} parent=1 // pred_fallthru
      _
    %133 = vsyncpa [#allocation3], 1
    %134 = vsyncpa [#allocation4], 1

</llo_original>
